<compile_context>
chip_gen: v7x
topology: tpu7x:2x2x1
jax: 0.10.0
libtpu: 0.0.40
codegen_flags: <defaults>
</compile_context>

<pallas_src>
import jax
import jax.numpy as jnp
from jax.experimental import pallas as pl
from jax.experimental.pallas import tpu as pltpu

EMB_DIM = 32
CAT_DIM = 2 * EMB_DIM  # 64
MAX_TILE_B = 2048      # samples per grid step (multiple of 128 -> lane-dense I/O)


def _round_up(x, m):
    return (x + m - 1) // m * m


def _vmem_limit_bytes(per_step_block_bytes):
    """Generation-aware scoped-VMEM request (review #5)."""
    try:
        cap = int(pltpu.get_tpu_info().vmem_capacity_bytes)
    except Exception:
        cap = 64 << 20  # conservative fallback: v7x per-TensorCore VMEM
    want = 2 * per_step_block_bytes + (4 << 20)   # double-buffered blocks + headroom
    return int(max(min(want, (cap * 3) // 4), 16 << 20))


def _recsys_kernel(uid_ref, cid_ref, pu_ref, pc_ref, b_ref, out_ref):
    """One batch tile of TILE_B samples.

    uid_ref, cid_ref : (1, TB)       int32  ids for this tile (lane-dense)
    pu_ref           : (NU_pad, 1)   f32    user_table @ w_user  (folded, VMEM-resident)
    pc_ref           : (NC_pad, 1)   f32    car_table  @ w_car   (folded, VMEM-resident)
    b_ref            : (1, 1)        f32    out.bias
    out_ref          : (1, TB)       f32    logits for this tile (lane-dense)
    """
    uid = uid_ref[...]                       # (1, TB)
    cid = cid_ref[...]                       # (1, TB)
    nu = pu_ref.shape[0]
    nc = pc_ref.shape[0]
    tb = uid.shape[1]

    # y_u[t] = pu[uid[t]] via exact selection: sum_r [r == uid[t]] * pu[r].
    # VPU compare/select + XLU sublane reduction; no MXU, no f32 one-hot buffer.
    # (Out-of-range ids select nothing and contribute 0 instead of faulting.)
    rows_u = jax.lax.broadcasted_iota(jnp.int32, (nu, tb), 0)
    pu_b = jnp.broadcast_to(pu_ref[...], (nu, tb))
    y_u = jnp.sum(jnp.where(rows_u == uid, pu_b, 0.0), axis=0, keepdims=True)

    rows_c = jax.lax.broadcasted_iota(jnp.int32, (nc, tb), 0)
    pc_b = jnp.broadcast_to(pc_ref[...], (nc, tb))
    y_c = jnp.sum(jnp.where(rows_c == cid, pc_b, 0.0), axis=0, keepdims=True)

    out_ref[...] = y_u + y_c + b_ref[...]    # (1, TB)


def recsys_forward(user_id, car_id, interaction, params):
    """Pallas implementation of RecSysModel.forward (returns logits only)."""
    del interaction  # unused by the PyTorch forward's returned value
    user_table, car_table, w, b = params     # w: (1, 64), b: (1,)
    B = int(user_id.shape[0])
    NU, NC = int(user_table.shape[0]), int(car_table.shape[0])

    # ---- fold Linear(64,1) into the tables (review #1), exact f32 ------------
    w = w.astype(jnp.float32)
    wu = w[0, :EMB_DIM]                       # (32,) user half of out.weight
    wc = w[0, EMB_DIM:]                       # (32,) car half of out.weight
    pu = jnp.sum(user_table.astype(jnp.float32) * wu[None, :], axis=1)   # (NU,)
    pc = jnp.sum(car_table.astype(jnp.float32) * wc[None, :], axis=1)    # (NC,)

    nu_pad = _round_up(NU, 8)
    nc_pad = _round_up(NC, 8)
    pu_col = jnp.zeros((nu_pad, 1), jnp.float32).at[:NU, 0].set(pu)
    pc_col = jnp.zeros((nc_pad, 1), jnp.float32).at[:NC, 0].set(pc)
    b2d = b.reshape(1, 1).astype(jnp.float32)

    # ---- lane-dense id rows, batch-tiled grid (review #4) --------------------
    tile_b = min(MAX_TILE_B, _round_up(max(B, 1), 128))
    num_tiles = pl.cdiv(B, tile_b)
    b_pad = num_tiles * tile_b
    uid = jnp.zeros((1, b_pad), jnp.int32).at[0, :B].set(user_id.astype(jnp.int32))
    cid = jnp.zeros((1, b_pad), jnp.int32).at[0, :B].set(car_id.astype(jnp.int32))

    # ---- generation-aware VMEM budget (review #5) -----------------------------
    per_step_block_bytes = 4 * (2 * tile_b + nu_pad + nc_pad + 1 + tile_b)
    vmem_limit = _vmem_limit_bytes(per_step_block_bytes)

    out = pl.pallas_call(
        _recsys_kernel,
        out_shape=jax.ShapeDtypeStruct((1, b_pad), jnp.float32),
        grid=(num_tiles,),
        in_specs=[
            pl.BlockSpec((1, tile_b), lambda t: (0, t)),       # uid tile
            pl.BlockSpec((1, tile_b), lambda t: (0, t)),       # cid tile
            pl.BlockSpec((nu_pad, 1), lambda t: (0, 0)),       # folded user table (resident)
            pl.BlockSpec((nc_pad, 1), lambda t: (0, 0)),       # folded car table (resident)
            pl.BlockSpec((1, 1), lambda t: (0, 0)),            # bias
        ],
        out_specs=pl.BlockSpec((1, tile_b), lambda t: (0, t)), # lane-dense logits row
        compiler_params=pltpu.CompilerParams(
            dimension_semantics=("parallel",),
            vmem_limit_bytes=vmem_limit,
        ),
    )(uid, cid, pu_col, pc_col, b2d)

    return out[0, :B].reshape(B, 1)


def init_params(num_users, num_cars, key):
    """Deterministic parameter init mirroring the torch module's shapes."""
    k1, k2, k3, k4 = jax.random.split(key, 4)
    # torch.nn.Embedding default: N(0, 1)
    user_table = jax.random.normal(k1, (num_users, EMB_DIM), dtype=jnp.float32)
    car_table = jax.random.normal(k2, (num_cars, EMB_DIM), dtype=jnp.float32)
    # torch.nn.Linear(64, 1) default: U(-1/sqrt(64), 1/sqrt(64))
    bound = 1.0 / (CAT_DIM ** 0.5)
    w = jax.random.uniform(k3, (1, CAT_DIM), jnp.float32, -bound, bound)  # (out, in)
    b = jax.random.uniform(k4, (1,), jnp.float32, -bound, bound)
    return user_table, car_table, w, b


def reference_forward(user_id, car_id, params):
    user_table, car_table, w, b = params
    ue = user_table[user_id]
    ce = car_table[car_id]
    x = jnp.concatenate([ue, ce], axis=-1)
    return jnp.dot(x, w.T, precision=jax.lax.Precision.HIGHEST) + b[None, :]


if __name__ == "__main__":
    num_users, num_cars, batch = 16, 16, 8

    key = jax.random.PRNGKey(0)
    kp, ku, kc, ki = jax.random.split(key, 4)

    params = init_params(num_users, num_cars, kp)
    user_id = jax.random.randint(ku, (batch,), 0, num_users, dtype=jnp.int32)
    car_id = jax.random.randint(kc, (batch,), 0, num_cars, dtype=jnp.int32)
    interaction = jax.random.bernoulli(ki, 0.5, (batch,)).astype(jnp.float32)

    out = recsys_forward(user_id, car_id, interaction, params)
    out = jax.block_until_ready(out)

    ref = reference_forward(user_id, car_id, params)
    assert out.shape == (batch, 1)
    assert jnp.allclose(out, ref, atol=1e-5, rtol=1e-5), float(jnp.max(jnp.abs(out - ref)))

    print("KERNEL_OK")
</pallas_src>

<mosaic_0001>
module attributes {stable_mosaic.version = 11 : i64} {
  func.func @_recsys_kernel(%arg0: i32, %arg1: memref<1x128xi32, #tpu.memory_space<vmem>>, %arg2: memref<1x128xi32, #tpu.memory_space<vmem>>, %arg3: memref<16x1xf32, #tpu.memory_space<vmem>>, %arg4: memref<16x1xf32, #tpu.memory_space<vmem>>, %arg5: memref<1x1xf32, #tpu.memory_space<vmem>>, %arg6: memref<1x128xf32, #tpu.memory_space<vmem>>) attributes {dimension_semantics = [#tpu.dimension_semantics<parallel>], iteration_bounds = array<i64: 1>, scalar_prefetch = 0 : i64, scratch_operands = 0 : i64, tpu.core_type = #tpu.core_type<tc>, window_params = [{transform_indices = @transform_0, window_bounds = array<i64: 1, 128>}, {transform_indices = @transform_1, window_bounds = array<i64: 1, 128>}, {pipeline_mode = #tpu.pipeline_mode<synchronous>, transform_indices = @transform_2, window_bounds = array<i64: 16, 1>}, {pipeline_mode = #tpu.pipeline_mode<synchronous>, transform_indices = @transform_3, window_bounds = array<i64: 16, 1>}, {pipeline_mode = #tpu.pipeline_mode<synchronous>, transform_indices = @transform_4, window_bounds = array<i64: 1, 1>}, {transform_indices = @transform_5, window_bounds = array<i64: 1, 128>}]} {
    %c0 = arith.constant 0 : index
    %c0_0 = arith.constant 0 : index
    %0 = vector.load %arg1[%c0, %c0_0] : memref<1x128xi32, #tpu.memory_space<vmem>>, vector<1x128xi32>
    %c0_1 = arith.constant 0 : index
    %c0_2 = arith.constant 0 : index
    %1 = vector.load %arg2[%c0_1, %c0_2] : memref<1x128xi32, #tpu.memory_space<vmem>>, vector<1x128xi32>
    %2 = tpu.iota {dimensions = array<i32: 0>} : vector<16x128xi32>
    %c0_3 = arith.constant 0 : index
    %c0_4 = arith.constant 0 : index
    %3 = vector.load %arg3[%c0_3, %c0_4] : memref<16x1xf32, #tpu.memory_space<vmem>>, vector<16x1xf32>
    %4 = vector.shape_cast %3 : vector<16x1xf32> to vector<16x1xf32>
    %5 = vector.broadcast %4 : vector<16x1xf32> to vector<16x128xf32>
    %6 = vector.broadcast %0 : vector<1x128xi32> to vector<16x128xi32>
    %7 = arith.cmpi eq, %2, %6 : vector<16x128xi32>
    %cst = arith.constant 0.000000e+00 : f32
    %8 = vector.broadcast %cst : f32 to vector<16x128xf32>
    %9 = arith.select %7, %5, %8 : vector<16x128xi1>, vector<16x128xf32>
    %cst_5 = arith.constant dense<0.000000e+00> : vector<128xf32>
    %10 = vector.multi_reduction <add>, %9, %cst_5 [0] : vector<16x128xf32> to vector<128xf32>
    %11 = vector.shape_cast %10 : vector<128xf32> to vector<1x128xf32>
    %12 = tpu.iota {dimensions = array<i32: 0>} : vector<16x128xi32>
    %c0_6 = arith.constant 0 : index
    %c0_7 = arith.constant 0 : index
    %13 = vector.load %arg4[%c0_6, %c0_7] : memref<16x1xf32, #tpu.memory_space<vmem>>, vector<16x1xf32>
    %14 = vector.shape_cast %13 : vector<16x1xf32> to vector<16x1xf32>
    %15 = vector.broadcast %14 : vector<16x1xf32> to vector<16x128xf32>
    %16 = vector.broadcast %1 : vector<1x128xi32> to vector<16x128xi32>
    %17 = arith.cmpi eq, %12, %16 : vector<16x128xi32>
    %cst_8 = arith.constant 0.000000e+00 : f32
    %18 = vector.broadcast %cst_8 : f32 to vector<16x128xf32>
    %19 = arith.select %17, %15, %18 : vector<16x128xi1>, vector<16x128xf32>
    %cst_9 = arith.constant dense<0.000000e+00> : vector<128xf32>
    %20 = vector.multi_reduction <add>, %19, %cst_9 [0] : vector<16x128xf32> to vector<128xf32>
    %21 = vector.shape_cast %20 : vector<128xf32> to vector<1x128xf32>
    %22 = arith.addf %11, %21 : vector<1x128xf32>
    %c0_10 = arith.constant 0 : index
    %c0_11 = arith.constant 0 : index
    %23 = vector.load %arg5[%c0_10, %c0_11] : memref<1x1xf32, #tpu.memory_space<vmem>>, vector<1x1xf32>
    %24 = vector.broadcast %23 : vector<1x1xf32> to vector<1x128xf32>
    %25 = arith.addf %22, %24 : vector<1x128xf32>
    %c0_12 = arith.constant 0 : index
    %c0_13 = arith.constant 0 : index
    %26 = vector.load %arg6[%c0_12, %c0_13] : memref<1x128xf32, #tpu.memory_space<vmem>>, vector<1x128xf32>
    tpu.vector_store %arg6[%c0_12, %c0_13], %25 {strides = array<i32>} : memref<1x128xf32, #tpu.memory_space<vmem>>, vector<1x128xf32>,
    return
  }
  func.func @transform_0(%arg0: i32) -> (i32, i32) {
    %c0_i32 = arith.constant 0 : i32
    %c0_i32_0 = arith.constant 0 : i32
    return %c0_i32, %arg0 : i32, i32
  }
  func.func @transform_1(%arg0: i32) -> (i32, i32) {
    %c0_i32 = arith.constant 0 : i32
    %c0_i32_0 = arith.constant 0 : i32
    return %c0_i32, %arg0 : i32, i32
  }
  func.func @transform_2(%arg0: i32) -> (i32, i32) {
    %c0_i32 = arith.constant 0 : i32
    %c0_i32_0 = arith.constant 0 : i32
    %c0_i32_1 = arith.constant 0 : i32
    return %c0_i32, %c0_i32_0 : i32, i32
  }
  func.func @transform_3(%arg0: i32) -> (i32, i32) {
    %c0_i32 = arith.constant 0 : i32
    %c0_i32_0 = arith.constant 0 : i32
    %c0_i32_1 = arith.constant 0 : i32
    return %c0_i32, %c0_i32_0 : i32, i32
  }
  func.func @transform_4(%arg0: i32) -> (i32, i32) {
    %c0_i32 = arith.constant 0 : i32
    %c0_i32_0 = arith.constant 0 : i32
    %c0_i32_1 = arith.constant 0 : i32
    return %c0_i32, %c0_i32_0 : i32, i32
  }
  func.func @transform_5(%arg0: i32) -> (i32, i32) {
    %c0_i32 = arith.constant 0 : i32
    %c0_i32_0 = arith.constant 0 : i32
    return %c0_i32, %arg0 : i32, i32
  }
}

</mosaic_0001>

<llo_original>
// kernel: tpu_custom_call.1
$region0: #{tpu_custom_call.1}
  #allocation0 [shape = 'u32[]', space=smem, size = 0x4, offset = 0x4, fixed_abs, tag = 'smem constant byte address 0x4 - core index']
  #allocation1 [shape = 'u32[144,128]{1,0:T(1,128)}', space=vmem, size = 0x12000, scoped, tag = 'internal scratch']
  #allocation2 [shape = 'f32[1,1]{1,0:T(1,128)S(1)}', space=vmem, size = 0x200, scoped, tag = 'scoped memory for tpu_custom_call.1']
  %s0 = inlined_call_operand.vmem [shape: s32[1,128], index: 0, kind: input, shape index: {}]
  %s1 = inlined_call_operand.vmem [shape: s32[1,128], index: 1, kind: input, shape index: {}]
  %s2 = inlined_call_operand.vmem [shape: f32[16,1], index: 2, kind: input, shape index: {}]
  %s3 = inlined_call_operand.vmem [shape: f32[16,1], index: 3, kind: input, shape index: {}]
  %s4 = inlined_call_operand.<no memory space> [shape: f32[1,1], index: 4, kind: input, shape index: {}]
  %s5 = inlined_call_operand.hbm [shape: f32[1,128], index: 5, kind: output, shape index: {}]
  %s6 = sld [smem:[#allocation0]]
  $region30: #{tpu_custom_call.1} parent=0
    _
  %s8 = ssub.s32 1, %s6
  %s9 = scalar_select 0, %s8, %s6
  %v10 = vstv %s4
  %11 = vst [vmem:[#allocation2] sm:$0x1] %v10
  $region1: #{tpu_custom_call.1} parent=0
    #allocation3 [shape = 'u8[512]{0}', space=vmem, size = 0x400, scoped, tag = 'output window, operand 0, single buffered']
    #allocation4 [shape = 's32[1]{0}', space=sflag, size = 0x4, scoped, tag = 'scoped memory for tpu_custom_call.1']
    %12 = vsyncpa [#allocation4], 0
    // Predicated region
    $region2: #{tpu_custom_call.1} parent=1 // pred_check
      _
    $region3: #{tpu_custom_call.1} parent=1 // pred_check_branch
      %14 = sbr.rel (0) target = $region5
    $region4: #{tpu_custom_call.1} parent=1 // pred_region
      _
    $region5: #{tpu_custom_call.1} parent=1 // pred_fallthru
      _
    // Predicated region
    $region6: #{tpu_custom_call.1} parent=1 // pred_check
      _
    $region7: #{tpu_custom_call.1} parent=1 // pred_check_branch
      %16 = sbr.rel (0) target = $region9
    $region8: #{tpu_custom_call.1} parent=1 // pred_region
      _
    $region9: #{tpu_custom_call.1} parent=1 // pred_fallthru
      _
    // Predicated region
    $region10: #{tpu_custom_call.1} parent=1 // pred_check
      _
    $region11: #{tpu_custom_call.1} parent=1 // pred_check_branch
      %18 = sbr.rel (0) target = $region13
    $region12: #{tpu_custom_call.1} parent=1 // pred_region
      _
    $region13: #{tpu_custom_call.1} parent=1 // pred_fallthru
      _
    // Predicated region
    $region14: #{tpu_custom_call.1} parent=1 // pred_check
      _
    $region15: #{tpu_custom_call.1} parent=1 // pred_check_branch
      %20 = sbr.rel (0) target = $region17
    $region16: #{tpu_custom_call.1} parent=1 // pred_region
      _
    $region17: #{tpu_custom_call.1} parent=1 // pred_fallthru
      _
    // Predicated region
    $region18: #{tpu_custom_call.1} parent=1 // pred_check
      _
    $region19: #{tpu_custom_call.1} parent=1 // pred_check_branch
      %22 = sbr.rel (0) target = $region21
    $region20: #{tpu_custom_call.1} parent=1 // pred_region
      _
    $region21: #{tpu_custom_call.1} parent=1 // pred_fallthru
      _
    %v23 = vld [vmem:[%s0] sm:$0x1]
    %v24 = vld [vmem:[%s1] sm:$0x1]
    %v25 = vlaneseq
    %v26 = vshrl.u32 %v25, 7
    %v27 = vadd.s32 %v26, 8
    %v28 = vld [vmem:[%s2] sm:$0xff]
    %v29 = vld [vmem:[%s2 + $0x8] sm:$0xff]
    %31 = vset.pattern.permute.xlu0 0
    %32 = vperm.xlu0 %31, %v28
    %v33 = vpop.permute.xlu0 %32
    %36 = vset.pattern.permute.xlu0 0
    %37 = vperm.xlu0 %36, %v29
    %v38 = vpop.permute.xlu0 %37
    %v40 = vlaneseq
    %v41 = vshrl.u32 %v40, 7
    %v42 = vsub.s32 0, %v41
    %v43 = vrot.slane %v23, %v42
    %vm44 = vcmp.eq.s32.totalorder %v26, %v43
    %vm45 = vcmp.eq.s32.totalorder %v27, %v43
    %v46 = vsel %vm44, %v33, 0.0
    %v47 = vsel %vm45, %v38, 0.0
    %v48 = vadd.f32 %v46, %v47
    %v49 = vrot.slane %v48, 4
    %v50 = vadd.f32 %v48, %v49
    %v51 = vrot.slane %v50, 2
    %v52 = vadd.f32 %v50, %v51
    %v53 = vrot.slane %v52, 1
    %v54 = vadd.f32 %v52, %v53
    %v55 = vld [vmem:[%s3] sm:$0xff]
    %v56 = vld [vmem:[%s3 + $0x8] sm:$0xff]
    %58 = vset.pattern.permute.xlu0 0
    %59 = vperm.xlu0 %58, %v55
    %v60 = vpop.permute.xlu0 %59
    %63 = vset.pattern.permute.xlu0 0
    %64 = vperm.xlu0 %63, %v56
    %v65 = vpop.permute.xlu0 %64
    %v67 = vlaneseq
    %v68 = vshrl.u32 %v67, 7
    %v69 = vsub.s32 0, %v68
    %v70 = vrot.slane %v24, %v69
    %vm71 = vcmp.eq.s32.totalorder %v26, %v70
    %vm72 = vcmp.eq.s32.totalorder %v27, %v70
    %v73 = vsel %vm71, %v60, 0.0
    %v74 = vsel %vm72, %v65, 0.0
    %v75 = vadd.f32 %v73, %v74
    %v76 = vrot.slane %v75, 4
    %v77 = vadd.f32 %v75, %v76
    %v78 = vrot.slane %v77, 2
    %v79 = vadd.f32 %v77, %v78
    %v80 = vrot.slane %v79, 1
    %v81 = vadd.f32 %v79, %v80
    %v82 = vadd.f32 %v54, %v81
    %v83 = vld [vmem:[#allocation2] sm:$0x1]
    %85 = vset.pattern.permute.xlu0 0
    %86 = vperm.xlu0 %85, %v83
    %v87 = vpop.permute.xlu0 %86
    %v89 = vlaneseq
    %v90 = vshrl.u32 %v89, 7
    %v91 = vsub.s32 0, %v90
    %v92 = vrot.slane %v87, %v91
    %v93 = vadd.f32 %v82, %v92
    %94 = vst [vmem:[#allocation3] sm:$0x1] %v93
    // Predicated region
    $region22: #{tpu_custom_call.1} parent=1 // pred_check
      _
    $region23: #{tpu_custom_call.1} parent=1 // pred_check_branch
      %96 = sbr.rel (0) target = $region25
    $region24: #{tpu_custom_call.1} parent=1 // pred_region
      %s98 = ssub.s32 16, 16
      %99 = vsyncadd [#allocation4], %s98
      %s101 = sshll.u32 [#allocation3], 4
      %s102 = int_to_ptr.vmem [resolvable:$true] %s101
      %104 = dma.vmem_to_hbm [thread:$0]  %s102, 16, %s5, [#allocation4]
    $region25: #{tpu_custom_call.1} parent=1 // pred_fallthru
      _
    // Predicated region
    $region26: #{tpu_custom_call.1} parent=1 // pred_check
      _
    $region27: #{tpu_custom_call.1} parent=1 // pred_check_branch
      %106 = sbr.rel (0) target = $region29
    $region28: #{tpu_custom_call.1} parent=1 // pred_region
      %107 = dma.done [#allocation4], 16
    $region29: #{tpu_custom_call.1} parent=1 // pred_fallthru
      _
    %108 = vsyncpa [#allocation4], 1

</llo_original>
